<compile_context>
chip_gen: v6e
topology: v6e:2x2x1
jax: 0.10.0
libtpu: 0.0.40
codegen_flags: <defaults>
</compile_context>

<pallas_src>
import functools
import math

import jax
import jax.numpy as jnp
import numpy as np
from jax import lax
from jax.experimental import pallas as pl
from jax.experimental.pallas import tpu as pltpu


# ---------------------------------------------------------------------------
# Pallas kernel: lane-dense conv-as-matmul with fused bias.
#   w_ref : (Cout, K)     K = Cin*kh*kw        (resident, constant block)
#   b_ref : (Cout, 1)                          (resident, constant block)
#   p_ref : (K, TM)       TM = tile of M = N*Ho*Wo  (lane-dense)
#   o_ref : (Cout, TM)                         (lane-dense output)
# ---------------------------------------------------------------------------
def _conv_matmul_kernel(w_ref, b_ref, p_ref, o_ref):
    y = jnp.dot(w_ref[...], p_ref[...], preferred_element_type=jnp.float32)
    o_ref[...] = (y + b_ref[...]).astype(o_ref.dtype)


def _pick_m_tile(m):
    """Largest lane-aligned M tile; single block when M is small."""
    if m <= 1024 or m % 128 != 0:
        return m
    for tm in (1024, 512, 256, 128):
        if m % tm == 0:
            return tm
    return m


def conv_matmul(w_mat, b_col, patches):
    cout, k = w_mat.shape
    k2, m = patches.shape
    assert k == k2
    tm = _pick_m_tile(m)
    grid = (m // tm,)
    return pl.pallas_call(
        _conv_matmul_kernel,
        out_shape=jax.ShapeDtypeStruct((cout, m), jnp.float32),
        grid_spec=pltpu.PrefetchScalarGridSpec(
            num_scalar_prefetch=0,
            grid=grid,
            in_specs=[
                pl.BlockSpec((cout, k), lambda i: (0, 0)),   # weight: resident
                pl.BlockSpec((cout, 1), lambda i: (0, 0)),   # bias:   resident
                pl.BlockSpec((k, tm), lambda i: (0, i)),     # patches tile
            ],
            out_specs=pl.BlockSpec((cout, tm), lambda i: (0, i)),
        ),
        compiler_params=pltpu.CompilerParams(
            dimension_semantics=("parallel",)),               # shard M over TCs (v7x)
    )(w_mat, b_col, patches)


# ---------------------------------------------------------------------------
# Layout plumbing around the kernel (plain JAX, fused by XLA under jit).
# ---------------------------------------------------------------------------
def _im2col_km(xp, kh, kw, sy, sx):
    """xp: padded NCHW -> patches (K, M) with K order (C, kh, kw) matching
    OIHW weight.reshape(Cout, Cin*kh*kw) and M order (n, ho, wo)."""
    N, C, Hp, Wp = xp.shape
    Ho = (Hp - kh) // sy + 1
    Wo = (Wp - kw) // sx + 1
    taps = []
    for i in range(kh):
        for j in range(kw):
            taps.append(
                lax.slice(xp, (0, 0, i, j),
                          (N, C, i + sy * (Ho - 1) + 1, j + sx * (Wo - 1) + 1),
                          (1, 1, sy, sx)))                    # (N, C, Ho, Wo)
    p = jnp.stack(taps, axis=2)                               # (N, C, kh*kw, Ho, Wo)
    p = p.transpose(1, 2, 0, 3, 4)                            # (C, kh*kw, N, Ho, Wo)
    return p.reshape(C * kh * kw, N * Ho * Wo), Ho, Wo


def _same_pad_amounts(size, k, s):
    pad = (s * (math.ceil(size / s) - 1) + k - size) / 2
    return math.floor(pad), math.ceil(pad)


@functools.partial(jax.jit, static_argnames=("kh", "kw", "sy", "sx"))
def padded_conv_forward(x, w_mat, b_col, *, kh, kw, sy, sx):
    """PaddedConv.forward: PadSameConv2d then Conv2d (NCHW in, NCHW out)."""
    N, C, H, W = x.shape
    cout = w_mat.shape[0]
    py0, py1 = _same_pad_amounts(H, kh, sy)
    px0, px1 = _same_pad_amounts(W, kw, sx)
    # lax.pad handles the (rare) negative-padding case (crop) like F.pad does.
    xp = lax.pad(x, jnp.float32(0),
                 ((0, 0, 0), (0, 0, 0), (py0, py1, 0), (px0, px1, 0)))
    patches, Ho, Wo = _im2col_km(xp, kh, kw, sy, sx)          # (K, M) lane-dense
    y = conv_matmul(w_mat, b_col, patches)                    # (Cout, M)
    # single transpose back to the PyTorch NCHW output convention
    return y.reshape(cout, N, Ho, Wo).transpose(1, 0, 2, 3)


# ---------------------------------------------------------------------------
# Pure-JAX reference (lax conv) for correctness checking.
# ---------------------------------------------------------------------------
def padded_conv_ref(x, w, b, stride):
    N, C, H, W = x.shape
    kh, kw = w.shape[2], w.shape[3]
    sy = sx = stride
    pads = [_same_pad_amounts(H, kh, sy), _same_pad_amounts(W, kw, sx)]
    y = lax.conv_general_dilated(x, w, (sy, sx), pads,
                                 dimension_numbers=("NCHW", "OIHW", "NCHW"))
    return y + b.reshape(1, -1, 1, 1)


if __name__ == "__main__":
    # Small shapes consistent with the module: batch=2, cin=4, 16x16, k=3, s=2.
    cin, cout, ksize, stride = 4, 8, 3, 2
    key = jax.random.PRNGKey(0)
    kx, kw_, kb = jax.random.split(key, 3)

    x = jax.random.normal(kx, (2, cin, 16, 16), jnp.float32)
    w = 0.1 * jax.random.normal(kw_, (cout, cin, ksize, ksize), jnp.float32)
    b = 0.1 * jax.random.normal(kb, (cout,), jnp.float32)

    # Fold the weight/bias into matmul layout ONCE at init (outside hot path).
    w_mat = w.reshape(cout, cin * ksize * ksize)              # (Cout, K)
    b_col = b.reshape(cout, 1)

    out = padded_conv_forward(x, w_mat, b_col, kh=ksize, kw=ksize,
                              sy=stride, sx=stride)
    out = jax.block_until_ready(out)

    ref = padded_conv_ref(x, w, b, stride)
    assert out.shape == (2, cout, 8, 8), out.shape
    np.testing.assert_allclose(np.asarray(out), np.asarray(ref),
                               rtol=1e-4, atol=1e-4)
    print("KERNEL_OK")
</pallas_src>

<mosaic_0001>
module attributes {stable_mosaic.version = 11 : i64} {
  func.func @_conv_matmul_kernel(%arg0: i32, %arg1: memref<8x36xf32, #tpu.memory_space<vmem>>, %arg2: memref<8x1xf32, #tpu.memory_space<vmem>>, %arg3: memref<36x128xf32, #tpu.memory_space<vmem>>, %arg4: memref<8x128xf32, #tpu.memory_space<vmem>>) attributes {dimension_semantics = [#tpu.dimension_semantics<parallel>], iteration_bounds = array<i64: 1>, scalar_prefetch = 0 : i64, scratch_operands = 0 : i64, tpu.core_type = #tpu.core_type<tc>, window_params = [{pipeline_mode = #tpu.pipeline_mode<synchronous>, transform_indices = @transform_0, window_bounds = array<i64: 8, 36>}, {pipeline_mode = #tpu.pipeline_mode<synchronous>, transform_indices = @transform_1, window_bounds = array<i64: 8, 1>}, {transform_indices = @transform_2, window_bounds = array<i64: 36, 128>}, {transform_indices = @transform_3, window_bounds = array<i64: 8, 128>}]} {
    %c0 = arith.constant 0 : index
    %c0_0 = arith.constant 0 : index
    %0 = vector.load %arg1[%c0, %c0_0] : memref<8x36xf32, #tpu.memory_space<vmem>>, vector<8x36xf32>
    %c0_1 = arith.constant 0 : index
    %c0_2 = arith.constant 0 : index
    %1 = vector.load %arg3[%c0_1, %c0_2] : memref<36x128xf32, #tpu.memory_space<vmem>>, vector<36x128xf32>
    %cst = arith.constant dense<0.000000e+00> : vector<8x128xf32>
    %2 = tpu.matmul %0, %1, %cst {dimension_numbers = #tpu.dot_dimension_numbers<[1], [0], [0], [1], [0, 0, 1, 1], [], []>} : vector<8x36xf32>, vector<36x128xf32>, vector<8x128xf32> -> vector<8x128xf32>
    %c0_3 = arith.constant 0 : index
    %c0_4 = arith.constant 0 : index
    %3 = vector.load %arg2[%c0_3, %c0_4] : memref<8x1xf32, #tpu.memory_space<vmem>>, vector<8x1xf32>
    %4 = vector.broadcast %3 : vector<8x1xf32> to vector<8x128xf32>
    %5 = arith.addf %2, %4 : vector<8x128xf32>
    %c0_5 = arith.constant 0 : index
    %c0_6 = arith.constant 0 : index
    %6 = vector.load %arg4[%c0_5, %c0_6] : memref<8x128xf32, #tpu.memory_space<vmem>>, vector<8x128xf32>
    tpu.vector_store %arg4[%c0_5, %c0_6], %5 {strides = array<i32>} : memref<8x128xf32, #tpu.memory_space<vmem>>, vector<8x128xf32>,
    return
  }
  func.func @transform_0(%arg0: i32) -> (i32, i32) {
    %c0_i32 = arith.constant 0 : i32
    %c0_i32_0 = arith.constant 0 : i32
    %c0_i32_1 = arith.constant 0 : i32
    return %c0_i32, %c0_i32_0 : i32, i32
  }
  func.func @transform_1(%arg0: i32) -> (i32, i32) {
    %c0_i32 = arith.constant 0 : i32
    %c0_i32_0 = arith.constant 0 : i32
    %c0_i32_1 = arith.constant 0 : i32
    return %c0_i32, %c0_i32_0 : i32, i32
  }
  func.func @transform_2(%arg0: i32) -> (i32, i32) {
    %c0_i32 = arith.constant 0 : i32
    %c0_i32_0 = arith.constant 0 : i32
    return %c0_i32, %arg0 : i32, i32
  }
  func.func @transform_3(%arg0: i32) -> (i32, i32) {
    %c0_i32 = arith.constant 0 : i32
    %c0_i32_0 = arith.constant 0 : i32
    return %c0_i32, %arg0 : i32, i32
  }
}

</mosaic_0001>

<llo_original>
// kernel: padded_conv_forward.1
$region0: #{padded_conv_forward.1}
  #allocation0 [shape = 'u32[]', space=smem, size = 0x4, offset = 0x4, fixed_abs, tag = 'smem constant byte address 0x4 - core index']
  #allocation1 [shape = 'u32[144,128]{1,0:T(1,128)}', space=vmem, size = 0x12000, scoped, tag = 'internal scratch']
  %s0 = inlined_call_operand.vmem [shape: f32[8,36], index: 0, kind: input, shape index: {}]
  %s1 = inlined_call_operand.vmem [shape: f32[8,1], index: 1, kind: input, shape index: {}]
  %s2 = inlined_call_operand.vmem [shape: f32[36,128], index: 2, kind: input, shape index: {}]
  %s3 = inlined_call_operand.vmem [shape: f32[8,128], index: 3, kind: output, shape index: {}]
  %s4 = sld [smem:[#allocation0]]
  $region22: #{padded_conv_forward.1} parent=0
    _
  %s6 = ssub.s32 1, %s4
  %s7 = scalar_select 0, %s6, %s4
  // Predicated region
  $region2: #{padded_conv_forward.1} parent=0 // pred_check
    _
  $region3: #{padded_conv_forward.1} parent=0 // pred_check_branch
    %9 = sbr.rel (0) target = $region5
  $region4: #{padded_conv_forward.1} parent=0 // pred_region
    _
  $region5: #{padded_conv_forward.1} parent=0 // pred_fallthru
    _
  // Predicated region
  $region6: #{padded_conv_forward.1} parent=0 // pred_check
    _
  $region7: #{padded_conv_forward.1} parent=0 // pred_check_branch
    %11 = sbr.rel (0) target = $region9
  $region8: #{padded_conv_forward.1} parent=0 // pred_region
    _
  $region9: #{padded_conv_forward.1} parent=0 // pred_fallthru
    _
  // Predicated region
  $region10: #{padded_conv_forward.1} parent=0 // pred_check
    _
  $region11: #{padded_conv_forward.1} parent=0 // pred_check_branch
    %13 = sbr.rel (0) target = $region13
  $region12: #{padded_conv_forward.1} parent=0 // pred_region
    _
  $region13: #{padded_conv_forward.1} parent=0 // pred_fallthru
    _
  %v14 = vld [vmem:[%s0] sm:$0xff]
  %v15 = vld [vmem:[%s2] sm:$0xff]
  %v16 = vld [vmem:[%s2 + $0x8] sm:$0xff]
  %v17 = vld [vmem:[%s2 + $0x10] sm:$0xff]
  %v18 = vld [vmem:[%s2 + $0x18] sm:$0xff]
  %v19 = vld [vmem:[%s2 + $0x20] sm:$0xf]
  %v20 = vld [vmem:[%s1] sm:$0xff]
  %22 = vset.pattern.permute.xlu0 0
  %23 = vperm.xlu0 %22, %v20
  %v24 = vpop.permute.xlu0 %23
  %vm26 = vcmask 293888
  %v28 = vsel %vm26, %v14, 0
  %vm30 = vcmask 1043456
  %v32 = vsel %vm30, %v19, 0
  %34 = vmatprep.subr.mxu0 0.0
  %35 = vmatpush1.msra.mxu0 0.0
  %36 = vmatprep.subr.mxu0 0.0
  %37 = vmatpush1.msra.mxu0 0.0
  %38 = vmatprep.subr.mxu0 0.0
  %39 = vmatpush1.msra.mxu0 0.0
  %40 = vmatprep.subr.mxu0 0.0
  %41 = vmatpush1.msra.mxu0 0.0
  %42 = vmatprep.subr.mxu0 0.0
  %43 = vmatpush1.msra.mxu0 0.0
  %44 = vmatprep.subr.mxu0 0.0
  %45 = vmatpush1.msra.mxu0 0.0
  %46 = vmatprep.subr.mxu0 0.0
  %47 = vmatpush1.msra.mxu0 0.0
  %48 = vmatprep.subr.mxu0 0.0
  %49 = vmatpush1.msra.mxu0 0.0
  %50 = vmatprep.subr.mxu0 0.0
  %51 = vmatpush1.msra.mxu0 0.0
  %52 = vmatprep.subr.mxu0 0.0
  %53 = vmatpush1.msra.mxu0 0.0
  %54 = vmatprep.subr.mxu0 0.0
  %55 = vmatpush1.msra.mxu0 0.0
  %56 = vmatprep.subr.mxu0 0.0
  %57 = vmatpush1.msra.mxu0 %v32
  %58 = vmatprep.subr.mxu0 0.0
  %59 = vmatpush1.msra.mxu0 %v18
  %60 = vmatprep.subr.mxu0 0.0
  %61 = vmatpush1.msra.mxu0 %v17
  %62 = vmatprep.subr.mxu0 0.0
  %63 = vmatpush1.msra.mxu0 %v16
  %64 = vmatprep.subr.mxu0 0.0
  %65 = vmatpush1.msra.mxu0 %v15
  %66 = vmatprep.subr.mxu0 0.0
  %67 = vmatpush2.msra.mxu0 0.0
  %68 = vmatprep.subr.mxu0 0.0
  %69 = vmatpush2.msra.mxu0 0.0
  %70 = vmatprep.subr.mxu0 0.0
  %71 = vmatpush2.msra.mxu0 0.0
  %72 = vmatprep.subr.mxu0 0.0
  %73 = vmatpush2.msra.mxu0 0.0
  %74 = vmatprep.subr.mxu0 0.0
  %75 = vmatpush2.msra.mxu0 0.0
  %76 = vmatprep.subr.mxu0 0.0
  %77 = vmatpush2.msra.mxu0 0.0
  %78 = vmatprep.subr.mxu0 0.0
  %79 = vmatpush2.msra.mxu0 0.0
  %80 = vmatprep.subr.mxu0 0.0
  %81 = vmatpush2.msra.mxu0 0.0
  %82 = vmatprep.subr.mxu0 0.0
  %83 = vmatpush2.msra.mxu0 0.0
  %84 = vmatprep.subr.mxu0 0.0
  %85 = vmatpush2.msra.mxu0 0.0
  %86 = vmatprep.subr.mxu0 0.0
  %87 = vmatpush2.msra.mxu0 0.0
  %88 = vmatprep.subr.mxu0 0.0
  %89 = vmatpush2.msra.mxu0 0.0
  %90 = vmatprep.subr.mxu0 0.0
  %91 = vmatpush2.msra.mxu0 0.0
  %92 = vmatprep.subr.mxu0 0.0
  %93 = vmatpush2.msra.mxu0 0.0
  %94 = vmatprep.subr.mxu0 0.0
  %95 = vmatpush2.msra.mxu0 0.0
  %96 = vmatprep.subr.mxu0 0.0
  %97 = vmatpush2.msra.mxu0 0.0
  %98 = vmatprep.mubr.f32.mxu0 0.0
  %99 = vmatmul.mubr.f32.gmra.mxu0 %v28
  %v100 = vpop.f32.mrf.mxu0
  %v101 = vadd.f32 %v24, %v100
  %v102 = vpop.f32.mrf.mxu0
  %103 = vdwg.mxu0
  %104 = vst [vmem:[%s3] sm:$0xff] %v101
  // Predicated region
  $region14: #{padded_conv_forward.1} parent=0 // pred_check
    _
  $region15: #{padded_conv_forward.1} parent=0 // pred_check_branch
    %106 = sbr.rel (0) target = $region17
  $region16: #{padded_conv_forward.1} parent=0 // pred_region
    _
  $region17: #{padded_conv_forward.1} parent=0 // pred_fallthru
    _
  // Predicated region
  $region18: #{padded_conv_forward.1} parent=0 // pred_check
    _
  $region19: #{padded_conv_forward.1} parent=0 // pred_check_branch
    %108 = sbr.rel (0) target = $region21
  $region20: #{padded_conv_forward.1} parent=0 // pred_region
    _
  $region21: #{padded_conv_forward.1} parent=0 // pred_fallthru
    _

</llo_original>
